<compile_context>
chip_gen: v7x
topology: tpu7x:2x2x1
jax: 0.10.0
libtpu: 0.0.40
codegen_flags: <defaults>
</compile_context>

<pallas_src>
import jax
import jax.numpy as jnp
from jax.experimental import pallas as pl
from jax.experimental.pallas import tpu as pltpu

N = 5    # batch (fixed by the module: it indexes e[0]..e[4])
C = 10   # number of classes
R = 4    # regression outputs per sample (20 total / 5 samples)


def myloss_kernel(clabel_ref, target_ref, lam_ref, c_ref, ro_ref, rl_ref, out_ref):
    # clabel_ref: SMEM (N,) int32;  target_ref: SMEM (N,) f32;  lam_ref: SMEM (1,) f32
    # c_ref: VMEM (N,C) f32;  ro_ref / rl_ref: VMEM (N,R) f32;  out_ref: SMEM (1,1) f32
    logits = c_ref[...]                                              # (N, C)

    # ---- cross entropy, numerically stable log-sum-exp per row ----
    m = jnp.max(logits, axis=-1, keepdims=True)                      # (N, 1)
    lse = jnp.log(jnp.sum(jnp.exp(logits - m), axis=-1, keepdims=True)) + m

    # Splat the SMEM scalars (labels / targets) into (N,1) vectors.  N = 5 is
    # a static unroll; this is a handful of scalar->vreg selects.
    rowc = jax.lax.broadcasted_iota(jnp.int32, (N, 1), 0)            # (N, 1)
    lblv_i = jnp.zeros((N, 1), jnp.int32)
    tgtv = jnp.zeros((N, 1), jnp.float32)
    for i in range(N):
        lblv_i = jnp.where(rowc == i, clabel_ref[i], lblv_i)
        tgtv = jnp.where(rowc == i, target_ref[i], tgtv)

    col = jax.lax.broadcasted_iota(jnp.int32, (N, C), 1)             # (N, C)
    onehot = col == lblv_i                                           # (N, C)
    picked = jnp.sum(jnp.where(onehot, logits, 0.0), axis=-1, keepdims=True)  # (N, 1)
    closs = jnp.sum(lse - picked, axis=(0, 1), keepdims=True) / jnp.float32(N)

    # ---- smooth L1 (beta = 1), masked by (clabel == target) per sample ----
    d = ro_ref[...] - rl_ref[...]                                    # (N, R)
    ad = jnp.abs(d)
    sl1 = jnp.where(ad < 1.0, 0.5 * d * d, ad - 0.5)                 # (N, R)
    erow = (lblv_i.astype(jnp.float32) == tgtv).astype(jnp.float32)  # (N, 1)
    rsum = jnp.sum(sl1 * erow, axis=(0, 1), keepdims=True)           # (1, 1)
    # eq.nonzero().shape[0] == R * (# matching samples)
    count = jnp.float32(R) * jnp.sum(erow, axis=(0, 1), keepdims=True)
    rloss = rsum / (count + jnp.float32(1e-4))                       # exact divide (parity)

    total = closs + lam_ref[0] * rloss                               # (1, 1)
    out_ref[0, 0] = total[0, 0]                                      # scalar SMEM store


@jax.jit
def myloss(coutput, clabel, target, routput, rlabel, lmbda):
    # Feed the kernel directly — no wrapper-side packing / HBM slab round-trip.
    c = coutput.astype(jnp.float32).reshape(N, C)
    ro = routput.astype(jnp.float32).reshape(N, R)
    rl = rlabel.astype(jnp.float32).reshape(N, R)
    lbl = clabel.reshape(N).astype(jnp.int32)
    tgt = target.reshape(N).astype(jnp.float32)
    lam = jnp.asarray(lmbda, jnp.float32).reshape(1)

    out = pl.pallas_call(
        myloss_kernel,
        out_shape=jax.ShapeDtypeStruct((1, 1), jnp.float32),
        in_specs=[
            pl.BlockSpec(memory_space=pltpu.MemorySpace.SMEM),   # clabel
            pl.BlockSpec(memory_space=pltpu.MemorySpace.SMEM),   # target
            pl.BlockSpec(memory_space=pltpu.MemorySpace.SMEM),   # lmbda
            pl.BlockSpec(memory_space=pltpu.MemorySpace.VMEM),   # coutput (logits)
            pl.BlockSpec(memory_space=pltpu.MemorySpace.VMEM),   # routput
            pl.BlockSpec(memory_space=pltpu.MemorySpace.VMEM),   # rlabel
        ],
        out_specs=pl.BlockSpec(memory_space=pltpu.MemorySpace.SMEM),
    )(lbl, tgt, lam, c, ro, rl)
    return out[0, 0]


def myloss_ref(coutput, clabel, target, routput, rlabel, lmbda):
    """Plain-JAX reference mirroring the PyTorch forward (for verification)."""
    logp = jax.nn.log_softmax(coutput.astype(jnp.float32), axis=-1)
    closs = -jnp.mean(logp[jnp.arange(N), clabel])
    d = routput.reshape(-1).astype(jnp.float32) - rlabel.reshape(-1).astype(jnp.float32)
    ad = jnp.abs(d)
    sl1 = jnp.where(ad < 1.0, 0.5 * d * d, ad - 0.5)
    e = (clabel.astype(jnp.float32) == target.reshape(-1)).astype(jnp.float32)
    eq = jnp.repeat(e, R)
    rloss = jnp.sum(eq * sl1) / (jnp.sum(eq) + 0.0001)
    return closs + lmbda * rloss


if __name__ == "__main__":
    key = jax.random.PRNGKey(0)
    k1, k2, k3, k4 = jax.random.split(key, 4)

    coutput = jax.random.normal(k1, (N, C), dtype=jnp.float32)      # logits
    clabel = jax.random.randint(k2, (N,), 0, C, dtype=jnp.int32)    # class labels
    # target: same as clabel for some rows, different for others (mixed mask)
    target = clabel.astype(jnp.float32)
    target = target.at[1].set(jnp.float32((clabel[1] + 1) % C))
    target = target.at[3].set(jnp.float32((clabel[3] + 2) % C))
    routput = jax.random.normal(k3, (N, R), dtype=jnp.float32)      # bbox regression
    rlabel = jax.random.normal(k4, (N, R), dtype=jnp.float32)
    lmbda = 0.5

    loss = myloss(coutput, clabel, target, routput, rlabel, lmbda)
    loss = jax.block_until_ready(loss)

    ref = myloss_ref(coutput, clabel, target, routput, rlabel, lmbda)
    assert jnp.allclose(loss, ref, rtol=1e-5, atol=1e-5), (loss, ref)

    print("KERNEL_OK")
</pallas_src>

<mosaic_0001>
module attributes {stable_mosaic.version = 11 : i64} {
  func.func @myloss_kernel(%arg0: memref<5xi32, #tpu.memory_space<smem>>, %arg1: memref<5xf32, #tpu.memory_space<smem>>, %arg2: memref<1xf32, #tpu.memory_space<smem>>, %arg3: memref<5x10xf32, #tpu.memory_space<vmem>>, %arg4: memref<5x4xf32, #tpu.memory_space<vmem>>, %arg5: memref<5x4xf32, #tpu.memory_space<vmem>>, %arg6: memref<1x1xf32, #tpu.memory_space<smem>>) attributes {dimension_semantics = [], scalar_prefetch = 0 : i64, scratch_operands = 0 : i64, tpu.core_type = #tpu.core_type<tc>} {
    %c0 = arith.constant 0 : index
    %c0_0 = arith.constant 0 : index
    %0 = vector.load %arg3[%c0, %c0_0] : memref<5x10xf32, #tpu.memory_space<vmem>>, vector<5x10xf32>
    %cst = arith.constant dense<0xFF800000> : vector<5xf32>
    %1 = vector.multi_reduction <maximumf>, %0, %cst [1] : vector<5x10xf32> to vector<5xf32>
    %2 = vector.shape_cast %1 : vector<5xf32> to vector<5x1xf32>
    %3 = vector.broadcast %2 : vector<5x1xf32> to vector<5x10xf32>
    %4 = arith.subf %0, %3 : vector<5x10xf32>
    %5 = math.exp %4 : vector<5x10xf32>
    %cst_1 = arith.constant dense<0.000000e+00> : vector<5xf32>
    %6 = vector.multi_reduction <add>, %5, %cst_1 [1] : vector<5x10xf32> to vector<5xf32>
    %7 = vector.shape_cast %6 : vector<5xf32> to vector<5x1xf32>
    %8 = math.log %7 : vector<5x1xf32>
    %9 = arith.addf %8, %2 : vector<5x1xf32>
    %10 = tpu.iota {dimensions = array<i32: 0>} : vector<5x1xi32>
    %c0_i32 = arith.constant 0 : i32
    %11 = vector.broadcast %c0_i32 : i32 to vector<5x1xi32>
    %cst_2 = arith.constant 0.000000e+00 : f32
    %12 = vector.broadcast %cst_2 : f32 to vector<5x1xf32>
    %c0_i32_3 = arith.constant 0 : i32
    %13 = vector.broadcast %c0_i32_3 : i32 to vector<5x1xi32>
    %14 = arith.cmpi eq, %10, %13 : vector<5x1xi32>
    %c0_4 = arith.constant 0 : index
    %15 = memref.load %arg0[%c0_4] : memref<5xi32, #tpu.memory_space<smem>>
    %16 = vector.broadcast %15 : i32 to vector<5x1xi32>
    %17 = arith.select %14, %16, %11 : vector<5x1xi1>, vector<5x1xi32>
    %c0_i32_5 = arith.constant 0 : i32
    %18 = vector.broadcast %c0_i32_5 : i32 to vector<5x1xi32>
    %19 = arith.cmpi eq, %10, %18 : vector<5x1xi32>
    %c0_6 = arith.constant 0 : index
    %20 = memref.load %arg1[%c0_6] : memref<5xf32, #tpu.memory_space<smem>>
    %21 = vector.broadcast %20 : f32 to vector<5x1xf32>
    %22 = arith.select %19, %21, %12 : vector<5x1xi1>, vector<5x1xf32>
    %c1_i32 = arith.constant 1 : i32
    %23 = vector.broadcast %c1_i32 : i32 to vector<5x1xi32>
    %24 = arith.cmpi eq, %10, %23 : vector<5x1xi32>
    %c1 = arith.constant 1 : index
    %25 = memref.load %arg0[%c1] : memref<5xi32, #tpu.memory_space<smem>>
    %26 = vector.broadcast %25 : i32 to vector<5x1xi32>
    %27 = arith.select %24, %26, %17 : vector<5x1xi1>, vector<5x1xi32>
    %c1_i32_7 = arith.constant 1 : i32
    %28 = vector.broadcast %c1_i32_7 : i32 to vector<5x1xi32>
    %29 = arith.cmpi eq, %10, %28 : vector<5x1xi32>
    %c1_8 = arith.constant 1 : index
    %30 = memref.load %arg1[%c1_8] : memref<5xf32, #tpu.memory_space<smem>>
    %31 = vector.broadcast %30 : f32 to vector<5x1xf32>
    %32 = arith.select %29, %31, %22 : vector<5x1xi1>, vector<5x1xf32>
    %c2_i32 = arith.constant 2 : i32
    %33 = vector.broadcast %c2_i32 : i32 to vector<5x1xi32>
    %34 = arith.cmpi eq, %10, %33 : vector<5x1xi32>
    %c2 = arith.constant 2 : index
    %35 = memref.load %arg0[%c2] : memref<5xi32, #tpu.memory_space<smem>>
    %36 = vector.broadcast %35 : i32 to vector<5x1xi32>
    %37 = arith.select %34, %36, %27 : vector<5x1xi1>, vector<5x1xi32>
    %c2_i32_9 = arith.constant 2 : i32
    %38 = vector.broadcast %c2_i32_9 : i32 to vector<5x1xi32>
    %39 = arith.cmpi eq, %10, %38 : vector<5x1xi32>
    %c2_10 = arith.constant 2 : index
    %40 = memref.load %arg1[%c2_10] : memref<5xf32, #tpu.memory_space<smem>>
    %41 = vector.broadcast %40 : f32 to vector<5x1xf32>
    %42 = arith.select %39, %41, %32 : vector<5x1xi1>, vector<5x1xf32>
    %c3_i32 = arith.constant 3 : i32
    %43 = vector.broadcast %c3_i32 : i32 to vector<5x1xi32>
    %44 = arith.cmpi eq, %10, %43 : vector<5x1xi32>
    %c3 = arith.constant 3 : index
    %45 = memref.load %arg0[%c3] : memref<5xi32, #tpu.memory_space<smem>>
    %46 = vector.broadcast %45 : i32 to vector<5x1xi32>
    %47 = arith.select %44, %46, %37 : vector<5x1xi1>, vector<5x1xi32>
    %c3_i32_11 = arith.constant 3 : i32
    %48 = vector.broadcast %c3_i32_11 : i32 to vector<5x1xi32>
    %49 = arith.cmpi eq, %10, %48 : vector<5x1xi32>
    %c3_12 = arith.constant 3 : index
    %50 = memref.load %arg1[%c3_12] : memref<5xf32, #tpu.memory_space<smem>>
    %51 = vector.broadcast %50 : f32 to vector<5x1xf32>
    %52 = arith.select %49, %51, %42 : vector<5x1xi1>, vector<5x1xf32>
    %c4_i32 = arith.constant 4 : i32
    %53 = vector.broadcast %c4_i32 : i32 to vector<5x1xi32>
    %54 = arith.cmpi eq, %10, %53 : vector<5x1xi32>
    %c4 = arith.constant 4 : index
    %55 = memref.load %arg0[%c4] : memref<5xi32, #tpu.memory_space<smem>>
    %56 = vector.broadcast %55 : i32 to vector<5x1xi32>
    %57 = arith.select %54, %56, %47 : vector<5x1xi1>, vector<5x1xi32>
    %c4_i32_13 = arith.constant 4 : i32
    %58 = vector.broadcast %c4_i32_13 : i32 to vector<5x1xi32>
    %59 = arith.cmpi eq, %10, %58 : vector<5x1xi32>
    %c4_14 = arith.constant 4 : index
    %60 = memref.load %arg1[%c4_14] : memref<5xf32, #tpu.memory_space<smem>>
    %61 = vector.broadcast %60 : f32 to vector<5x1xf32>
    %62 = arith.select %59, %61, %52 : vector<5x1xi1>, vector<5x1xf32>
    %63 = tpu.iota {dimensions = array<i32: 1>} : vector<5x10xi32>
    %64 = vector.broadcast %57 : vector<5x1xi32> to vector<5x10xi32>
    %65 = arith.cmpi eq, %63, %64 : vector<5x10xi32>
    %cst_15 = arith.constant 0.000000e+00 : f32
    %66 = vector.broadcast %cst_15 : f32 to vector<5x10xf32>
    %67 = arith.select %65, %0, %66 : vector<5x10xi1>, vector<5x10xf32>
    %cst_16 = arith.constant dense<0.000000e+00> : vector<5xf32>
    %68 = vector.multi_reduction <add>, %67, %cst_16 [1] : vector<5x10xf32> to vector<5xf32>
    %69 = vector.shape_cast %68 : vector<5xf32> to vector<5x1xf32>
    %70 = arith.subf %9, %69 : vector<5x1xf32>
    %71 = vector.shape_cast %70 : vector<5x1xf32> to vector<1x5x1xf32>
    %cst_17 = arith.constant dense<0.000000e+00> : vector<1xf32>
    %72 = vector.multi_reduction <add>, %71, %cst_17 [1, 2] : vector<1x5x1xf32> to vector<1xf32>
    %73 = vector.shape_cast %72 : vector<1xf32> to vector<1x1x1xf32>
    %74 = vector.extract %73[0, 0, 0] : f32 from vector<1x1x1xf32>
    %75 = vector.broadcast %74 : f32 to vector<1x1xf32>
    %cst_18 = arith.constant 5.000000e+00 : f32
    %76 = vector.broadcast %cst_18 : f32 to vector<1x1xf32>
    %77 = arith.divf %75, %76 : vector<1x1xf32>
    %c0_19 = arith.constant 0 : index
    %c0_20 = arith.constant 0 : index
    %78 = vector.load %arg4[%c0_19, %c0_20] : memref<5x4xf32, #tpu.memory_space<vmem>>, vector<5x4xf32>
    %c0_21 = arith.constant 0 : index
    %c0_22 = arith.constant 0 : index
    %79 = vector.load %arg5[%c0_21, %c0_22] : memref<5x4xf32, #tpu.memory_space<vmem>>, vector<5x4xf32>
    %80 = arith.subf %78, %79 : vector<5x4xf32>
    %81 = math.absf %80 : vector<5x4xf32>
    %cst_23 = arith.constant 1.000000e+00 : f32
    %82 = vector.broadcast %cst_23 : f32 to vector<5x4xf32>
    %83 = arith.cmpf olt, %81, %82 : vector<5x4xf32>
    %cst_24 = arith.constant 5.000000e-01 : f32
    %84 = vector.broadcast %cst_24 : f32 to vector<5x4xf32>
    %85 = arith.mulf %84, %80 : vector<5x4xf32>
    %86 = arith.mulf %85, %80 : vector<5x4xf32>
    %cst_25 = arith.constant 5.000000e-01 : f32
    %87 = vector.broadcast %cst_25 : f32 to vector<5x4xf32>
    %88 = arith.subf %81, %87 : vector<5x4xf32>
    %89 = arith.select %83, %86, %88 : vector<5x4xi1>, vector<5x4xf32>
    %90 = arith.sitofp %57 : vector<5x1xi32> to vector<5x1xf32>
    %91 = arith.cmpf oeq, %90, %62 : vector<5x1xf32>
    %92 = arith.extui %91 : vector<5x1xi1> to vector<5x1xi32>
    %93 = arith.sitofp %92 : vector<5x1xi32> to vector<5x1xf32>
    %94 = vector.broadcast %93 : vector<5x1xf32> to vector<5x4xf32>
    %95 = arith.mulf %89, %94 : vector<5x4xf32>
    %96 = vector.shape_cast %95 : vector<5x4xf32> to vector<1x5x4xf32>
    %cst_26 = arith.constant dense<0.000000e+00> : vector<1xf32>
    %97 = vector.multi_reduction <add>, %96, %cst_26 [1, 2] : vector<1x5x4xf32> to vector<1xf32>
    %98 = vector.shape_cast %97 : vector<1xf32> to vector<1x1x1xf32>
    %99 = vector.extract %98[0, 0, 0] : f32 from vector<1x1x1xf32>
    %100 = vector.broadcast %99 : f32 to vector<1x1xf32>
    %101 = vector.shape_cast %93 : vector<5x1xf32> to vector<1x5x1xf32>
    %cst_27 = arith.constant dense<0.000000e+00> : vector<1xf32>
    %102 = vector.multi_reduction <add>, %101, %cst_27 [1, 2] : vector<1x5x1xf32> to vector<1xf32>
    %103 = vector.shape_cast %102 : vector<1xf32> to vector<1x1x1xf32>
    %104 = vector.extract %103[0, 0, 0] : f32 from vector<1x1x1xf32>
    %105 = vector.broadcast %104 : f32 to vector<1x1xf32>
    %cst_28 = arith.constant 4.000000e+00 : f32
    %106 = vector.broadcast %cst_28 : f32 to vector<1x1xf32>
    %107 = arith.mulf %106, %105 : vector<1x1xf32>
    %cst_29 = arith.constant 9.99999974E-5 : f32
    %108 = vector.broadcast %cst_29 : f32 to vector<1x1xf32>
    %109 = arith.addf %107, %108 : vector<1x1xf32>
    %110 = arith.divf %100, %109 : vector<1x1xf32>
    %c0_30 = arith.constant 0 : index
    %111 = memref.load %arg2[%c0_30] : memref<1xf32, #tpu.memory_space<smem>>
    %112 = vector.broadcast %111 : f32 to vector<1x1xf32>
    %113 = arith.mulf %112, %110 : vector<1x1xf32>
    %114 = arith.addf %77, %113 : vector<1x1xf32>
    %115 = vector.extract %114[0, 0] : f32 from vector<1x1xf32>
    %c0_31 = arith.constant 0 : index
    %c0_32 = arith.constant 0 : index
    %116 = memref.load %arg6[%c0_31, %c0_32] : memref<1x1xf32, #tpu.memory_space<smem>>
    memref.store %115, %arg6[%c0_31, %c0_32] : memref<1x1xf32, #tpu.memory_space<smem>>
    return
  }
}

</mosaic_0001>

<llo_original>
// kernel: myloss.1
$region0: #{myloss.1}
  #allocation0 [shape = 'u32[]', space=smem, size = 0x4, offset = 0x4, fixed_abs, tag = 'smem constant byte address 0x4 - core index']
  #allocation1 [shape = 'u32[144,128]{1,0:T(1,128)}', space=vmem, size = 0x12000, scoped, tag = 'internal scratch']
  #allocation2 [shape = 'f32[1]{0:T(128)S(6)}', space=smem, size = 0x200, scoped, tag = 'scoped memory for myloss.1']
  %s0 = inlined_call_operand.vmem [shape: s32[5], index: 0, kind: input, shape index: {}]
  %s1 = inlined_call_operand.vmem [shape: f32[5], index: 1, kind: input, shape index: {}]
  %s2 = inlined_call_operand.<no memory space> [shape: f32[1], index: 2, kind: input, shape index: {}]
  %s3 = inlined_call_operand.vmem [shape: f32[5,10], index: 3, kind: input, shape index: {}]
  %s4 = inlined_call_operand.vmem [shape: f32[5,4], index: 4, kind: input, shape index: {}]
  %s5 = inlined_call_operand.vmem [shape: f32[5,4], index: 5, kind: input, shape index: {}]
  %s6 = inlined_call_operand.hbm [shape: f32[1,1], index: 6, kind: output, shape index: {}]
  %s7 = sld [smem:[#allocation0]]
  $region42: #{myloss.1} parent=0
    _
  %s9 = ssub.s32 1, %s7
  %s10 = scalar_select 0, %s9, %s7
  %11 = sst [smem:[#allocation2]] %s2
  $region1: #{myloss.1} parent=0
    #allocation3 [shape = 'u8[512]{0}', space=smem, size = 0x200, scoped, tag = 'input window, operand 0, single buffered']
    #allocation4 [shape = 's32[1]{0}', space=sflag, size = 0x4, scoped, tag = 'scoped memory for myloss.1']
    #allocation5 [shape = 's32[1]{0}', space=sflag, size = 0x4, scoped, tag = 'scoped memory for myloss.1']
    #allocation6 [shape = 'u8[512]{0}', space=smem, size = 0x200, scoped, tag = 'input window, operand 1, single buffered']
    #allocation7 [shape = 's32[1]{0}', space=sflag, size = 0x4, scoped, tag = 'scoped memory for myloss.1']
    #allocation8 [shape = 'u8[512]{0}', space=smem, size = 0x200, scoped, tag = 'output window, operand 0, single buffered']
    %12 = vsyncpa [#allocation5], 0
    %13 = vsyncpa [#allocation7], 0
    %14 = vsyncpa [#allocation4], 0
    // Predicated region
    $region2: #{myloss.1} parent=1 // pred_check
      _
    $region3: #{myloss.1} parent=1 // pred_check_branch
      %16 = sbr.rel (0) target = $region5
    $region4: #{myloss.1} parent=1 // pred_region
      %s18 = ssub.s32 16, 16
      %19 = vsyncadd [#allocation5], %s18
      %s21 = sshll.u32 %s0, 4
      %s22 = int_to_ptr.vmem [resolvable:$true] %s21
      %24 = dma.vmem_to_smem %s22, 16, [#allocation3], [#allocation5]
    $region5: #{myloss.1} parent=1 // pred_fallthru
      _
    // Predicated region
    $region6: #{myloss.1} parent=1 // pred_check
      _
    $region7: #{myloss.1} parent=1 // pred_check_branch
      %26 = sbr.rel (0) target = $region9
    $region8: #{myloss.1} parent=1 // pred_region
      %s28 = ssub.s32 16, 16
      %29 = vsyncadd [#allocation7], %s28
      %s31 = sshll.u32 %s1, 4
      %s32 = int_to_ptr.vmem [resolvable:$true] %s31
      %34 = dma.vmem_to_smem %s32, 16, [#allocation6], [#allocation7]
    $region9: #{myloss.1} parent=1 // pred_fallthru
      _
    // Predicated region
    $region10: #{myloss.1} parent=1 // pred_check
      _
    $region11: #{myloss.1} parent=1 // pred_check_branch
      %36 = sbr.rel (0) target = $region13
    $region12: #{myloss.1} parent=1 // pred_region
      _
    $region13: #{myloss.1} parent=1 // pred_fallthru
      _
    // Predicated region
    $region14: #{myloss.1} parent=1 // pred_check
      _
    $region15: #{myloss.1} parent=1 // pred_check_branch
      %38 = sbr.rel (0) target = $region17
    $region16: #{myloss.1} parent=1 // pred_region
      _
    $region17: #{myloss.1} parent=1 // pred_fallthru
      _
    // Predicated region
    $region18: #{myloss.1} parent=1 // pred_check
      _
    $region19: #{myloss.1} parent=1 // pred_check_branch
      %40 = sbr.rel (0) target = $region21
    $region20: #{myloss.1} parent=1 // pred_region
      _
    $region21: #{myloss.1} parent=1 // pred_fallthru
      _
    // Predicated region
    $region22: #{myloss.1} parent=1 // pred_check
      _
    $region23: #{myloss.1} parent=1 // pred_check_branch
      %42 = sbr.rel (0) target = $region25
    $region24: #{myloss.1} parent=1 // pred_region
      _
    $region25: #{myloss.1} parent=1 // pred_fallthru
      _
    // Predicated region
    $region26: #{myloss.1} parent=1 // pred_check
      _
    $region27: #{myloss.1} parent=1 // pred_check_branch
      %44 = sbr.rel (0) target = $region29
    $region28: #{myloss.1} parent=1 // pred_region
      %45 = dma.done [#allocation5], 16
    $region29: #{myloss.1} parent=1 // pred_fallthru
      _
    // Predicated region
    $region30: #{myloss.1} parent=1 // pred_check
      _
    $region31: #{myloss.1} parent=1 // pred_check_branch
      %47 = sbr.rel (0) target = $region33
    $region32: #{myloss.1} parent=1 // pred_region
      %48 = dma.done [#allocation7], 16
    $region33: #{myloss.1} parent=1 // pred_fallthru
      _
    %49 = sfence
    %v50 = vld [vmem:[%s3] sm:$0x1f]
    %vm51 = vcmask 77824
    %v52 = vsel %vm51, %v50, -inf
    %53 = vmax.xlane.f32.xlu0 %v52
    %v54 = vpop.xlane.xlu0 %53
    %v55 = vsub.f32 %v50, %v54
    %v56 = vmul.f32 %v55, 1.442695
    %v57 = vpow.pop %v56
    %v58 = vsel %vm51, %v57, 0.0
    %59 = vadd.xlane.f32.xlu0 %v58
    %v60 = vpop.xlane.xlu0 %59
    %v61 = vlog2.pop %v60
    %v62 = vmul.f32 %v61, 0.6931472
    %v63 = vadd.f32 %v62, %v54
    %v64 = vlaneseq
    %v65 = vshrl.u32 %v64, 7
    %vm66 = vcmp.eq.s32.totalorder %v65, 0
    %s67 = sld [smem:[#allocation3]]
    %v68 = vstv %s67
    %v69 = vsel %vm66, %v68, 0
    %s70 = sld [smem:[#allocation6]]
    %v71 = vstv %s70
    %v72 = vsel %vm66, %v71, 0.0
    %vm73 = vcmp.eq.s32.totalorder %v65, 1
    %s74 = sld [smem:[#allocation3 + $0x1]]
    %v75 = vstv %s74
    %v76 = vsel %vm73, %v75, %v69
    %s77 = sld [smem:[#allocation6 + $0x1]]
    %v78 = vstv %s77
    %v79 = vsel %vm73, %v78, %v72
    %vm80 = vcmp.eq.s32.totalorder %v65, 2
    %s81 = sld [smem:[#allocation3 + $0x2]]
    %v82 = vstv %s81
    %v83 = vsel %vm80, %v82, %v76
    %s84 = sld [smem:[#allocation6 + $0x2]]
    %v85 = vstv %s84
    %v86 = vsel %vm80, %v85, %v79
    %vm87 = vcmp.eq.s32.totalorder %v65, 3
    %s88 = sld [smem:[#allocation3 + $0x3]]
    %v89 = vstv %s88
    %v90 = vsel %vm87, %v89, %v83
    %s91 = sld [smem:[#allocation6 + $0x3]]
    %v92 = vstv %s91
    %v93 = vsel %vm87, %v92, %v86
    %vm94 = vcmp.eq.s32.totalorder %v65, 4
    %s95 = sld [smem:[#allocation3 + $0x4]]
    %v96 = vstv %s95
    %v97 = vsel %vm94, %v96, %v90
    %s98 = sld [smem:[#allocation6 + $0x4]]
    %v99 = vstv %s98
    %v100 = vsel %vm94, %v99, %v93
    %v101 = vlaneseq
    %v102 = vand.u32 %v101, 127
    %vm103 = vcmp.eq.s32.totalorder %v102, %v97
    %v104 = vsel %vm103, %v50, 0.0
    %v105 = vsel %vm51, %v104, 0.0
    %106 = vadd.xlane.f32.xlu0 %v105
    %v107 = vpop.xlane.xlu0 %106
    %v108 = vsub.f32 %v63, %v107
    %vm109 = vcmask 4096
    %v110 = vsel %vm109, %v108, 0.0
    %111 = vadd.xlane.f32.xlu0 %v110
    %v112 = vpop.xlane.xlu0 %111
    %v113 = vrot.slane %v112, 4
    %v114 = vadd.f32 %v112, %v113
    %v115 = vrot.slane %v114, 2
    %v116 = vadd.f32 %v114, %v115
    %v117 = vrot.slane %v116, 1
    %v118 = vadd.f32 %v116, %v117
    %s119 = vtos %v118
    %v120 = vstv %s119
    %v121 = vrcp.pop 5.0
    %v122 = vmul.f32 %v120, %v121
    %v123 = vld [vmem:[%s4] sm:$0x1f]
    %v124 = vld [vmem:[%s5] sm:$0x1f]
    %v125 = vsub.f32 %v123, %v124
    %v126 = vand.u32 2147483647, %v125
    %vm127 = vcmp.lt.f32.partialorder %v126, 1.0
    %v128 = vmul.f32 %v125, 0.5
    %v129 = vmul.f32 %v128, %v125
    %v130 = vsub.f32 %v126, 0.5
    %v131 = vsel %vm127, %v129, %v130
    %v132 = vcvt.s32.f32 %v97
    %vm133 = vcmp.eq.f32.partialorder %v132, %v100
    %v134 = vsel %vm133, 1, 0
    %v135 = vcvt.s32.f32 %v134
    %v136 = vmul.f32 %v131, %v135
    %vm137 = vcmask 28672
    %v138 = vsel %vm137, %v136, 0.0
    %139 = vadd.xlane.f32.xlu0 %v138
    %v140 = vpop.xlane.xlu0 %139
    %v141 = vrot.slane %v140, 4
    %v142 = vadd.f32 %v140, %v141
    %v143 = vrot.slane %v142, 2
    %v144 = vadd.f32 %v142, %v143
    %v145 = vrot.slane %v144, 1
    %v146 = vadd.f32 %v144, %v145
    %s147 = vtos %v146
    %v148 = vstv %s147
    %v149 = vsel %vm109, %v135, 0.0
    %150 = vadd.xlane.f32.xlu0 %v149
    %v151 = vpop.xlane.xlu0 %150
    %v152 = vrot.slane %v151, 4
    %v153 = vadd.f32 %v151, %v152
    %v154 = vrot.slane %v153, 2
    %v155 = vadd.f32 %v153, %v154
    %v156 = vrot.slane %v155, 1
    %v157 = vadd.f32 %v155, %v156
    %s158 = vtos %v157
    %v159 = vstv %s158
    %v160 = vmul.f32 %v159, 4.0
    %v161 = vadd.f32 %v160, 0.0001
    %v162 = vrcp.pop %v161
    %v163 = vmul.f32 %v148, %v162
    %s164 = sld [smem:[#allocation2]]
    %v165 = vstv %s164
    %v166 = vmul.f32 %v165, %v163
    %v167 = vadd.f32 %v122, %v166
    %s168 = vtos %v167
    %s169 = scalar_lea.smem [#allocation8], 0
    %170 = sst [smem:[%s169]] %s168
    // Predicated region
    $region34: #{myloss.1} parent=1 // pred_check
      _
    $region35: #{myloss.1} parent=1 // pred_check_branch
      %172 = sbr.rel (0) target = $region37
    $region36: #{myloss.1} parent=1 // pred_region
      %s174 = ssub.s32 16, 16
      %175 = vsyncadd [#allocation4], %s174
      %178 = dma.smem_to_hbm [#allocation8], 16, %s6, [#allocation4]
    $region37: #{myloss.1} parent=1 // pred_fallthru
      _
    // Predicated region
    $region38: #{myloss.1} parent=1 // pred_check
      _
    $region39: #{myloss.1} parent=1 // pred_check_branch
      %180 = sbr.rel (0) target = $region41
    $region40: #{myloss.1} parent=1 // pred_region
      %181 = dma.done [#allocation4], 16
    $region41: #{myloss.1} parent=1 // pred_fallthru
      _
    %182 = sfence
    %183 = vsyncpa [#allocation4], 1
    %184 = vsyncpa [#allocation5], 1
    %185 = vsyncpa [#allocation7], 1

</llo_original>
